<compile_context>
chip_gen: v7x
topology: tpu7x:2x2x1
jax: 0.10.0
libtpu: 0.0.40
codegen_flags: <defaults>
</compile_context>

<pallas_src>
import math

import jax
import jax.numpy as jnp
from jax import lax
from jax.experimental import pallas as pl
from jax.experimental.pallas import tpu as pltpu

EPS = 1e-5
TARGET_BLOCK_BYTES = 4 << 20  # ~4 MiB per operand block (HBM-roofline plateau)


def addnorm_kernel(x_ref, y_ref, g_ref, b_ref, o_ref):
    # dropout = identity (eval mode); add in f32 for accurate statistics.
    z = x_ref[...].astype(jnp.float32) + y_ref[...].astype(jnp.float32)
    mean = jnp.mean(z, axis=-1, keepdims=True)
    c = z - mean
    var = jnp.mean(c * c, axis=-1, keepdims=True)
    inv = lax.rsqrt(var + EPS)
    g = g_ref[...].astype(jnp.float32)
    b = b_ref[...].astype(jnp.float32)
    o_ref[...] = (c * inv * g + b).astype(o_ref.dtype)


def _round_up(x, m):
    return (x + m - 1) // m * m


def add_norm(x, y, gamma, beta, *, row_tile=None):
    """out = LayerNorm(dropout(Y) + X) over the last dim (eval-mode dropout).

    x, y: (..., H); gamma, beta: (H,).  row_tile is a tunable sweep parameter;
    by default it is derived from a ~4 MiB per-operand block target.
    """
    assert x.shape == y.shape
    H = x.shape[-1]
    R = math.prod(x.shape[:-1])
    x2 = x.reshape(R, H)
    y2 = y.reshape(R, H)

    in_bytes = jnp.dtype(x.dtype).itemsize
    # Sublane packing: 8 rows/vreg for 32-bit, 16 for bf16, 32 for 8-bit dtypes.
    pack = 8 * max(1, 4 // in_bytes)

    if row_tile is None:
        # Bytes, not rows, is the right knob: ~4 MiB/operand block saturates
        # HBM bandwidth on v5e/v6e/v7x while keeping VMEM footprint modest.
        tr = max(pack, (TARGET_BLOCK_BYTES // (H * in_bytes)) // pack * pack)
    else:
        tr = max(pack, _round_up(row_tile, pack))

    # Block second-to-last dim must be a multiple of 8 (sublanes) OR equal the
    # full array dim; if the tile covers everything just use the full dim.
    if tr >= R:
        tr = R
    else:
        # Aim for >=4 grid steps so v7x's two TensorCores each get >=2 blocks
        # (keeps both cores busy AND double-buffered).
        steps = pl.cdiv(R, tr)
        if steps < 4 and R >= 4 * pack:
            tr = max(pack, (R // 4) // pack * pack)
            steps = pl.cdiv(R, tr)
        # Prefer an even step count so the two cores don't imbalance by one.
        if steps > 1 and steps % 2 == 1:
            tr_alt = _round_up(pl.cdiv(R, steps + 1), pack)
            if 0 < tr_alt < R and pl.cdiv(R, tr_alt) % 2 == 0:
                tr = tr_alt

    grid = pl.cdiv(R, tr)

    # VMEM limit from the actual footprint: x/y/out double-buffered in the
    # input dtype + ~2 f32 tile-sized temporaries + gamma/beta + margin.
    block_bytes = tr * H * in_bytes
    f32_block_bytes = tr * H * 4
    footprint = 6 * block_bytes + 2 * f32_block_bytes + 4 * H * 4 + (4 << 20)
    try:
        vmem_phys = pltpu.get_tpu_info().vmem_capacity_bytes
    except Exception:  # pragma: no cover - fall back to the smallest (v7x)
        vmem_phys = 64 << 20
    vmem_limit = max(16 << 20, min(footprint, int(vmem_phys * 0.9)))

    out = pl.pallas_call(
        addnorm_kernel,
        out_shape=jax.ShapeDtypeStruct((R, H), x.dtype),
        grid_spec=pltpu.PrefetchScalarGridSpec(
            num_scalar_prefetch=0,
            grid=(grid,),
            in_specs=[
                pl.BlockSpec((tr, H), lambda i: (i, 0)),   # X rows
                pl.BlockSpec((tr, H), lambda i: (i, 0)),   # Y rows
                pl.BlockSpec((1, H), lambda i: (0, 0)),    # gamma (broadcast)
                pl.BlockSpec((1, H), lambda i: (0, 0)),    # beta  (broadcast)
            ],
            out_specs=pl.BlockSpec((tr, H), lambda i: (i, 0)),
        ),
        compiler_params=pltpu.CompilerParams(
            dimension_semantics=("parallel",),
            vmem_limit_bytes=vmem_limit,
        ),
    )(x2, y2, gamma.reshape(1, H), beta.reshape(1, H))

    return out.reshape(x.shape)


def add_norm_ref(x, y, gamma, beta):
    z = x.astype(jnp.float32) + y.astype(jnp.float32)
    mean = jnp.mean(z, axis=-1, keepdims=True)
    var = jnp.mean((z - mean) ** 2, axis=-1, keepdims=True)
    return ((z - mean) * lax.rsqrt(var + EPS) * gamma + beta).astype(x.dtype)


if __name__ == "__main__":
    # 1) Small demo consistent with the module: (batch=2, seq=8, hidden=32).
    B, S, H = 2, 8, 32
    kx, ky = jax.random.split(jax.random.PRNGKey(0))
    X = jax.random.normal(kx, (B, S, H), dtype=jnp.float32)
    Y = jax.random.normal(ky, (B, S, H), dtype=jnp.float32)

    # nn.LayerNorm default init: weight=ones, bias=zeros (deterministic).
    gamma = jnp.ones((H,), dtype=jnp.float32)
    beta = jnp.zeros((H,), dtype=jnp.float32)

    out = jax.block_until_ready(add_norm(X, Y, gamma, beta))
    ref = add_norm_ref(X, Y, gamma, beta)
    assert out.shape == (B, S, H)
    assert jnp.max(jnp.abs(out - ref)) < 1e-4

    # 2) Ragged row count (2*9 rows) + lane-dense H=128: single full-dim block.
    B2, S2, H2 = 2, 9, 128
    k1, k2 = jax.random.split(jax.random.PRNGKey(1))
    X2 = jax.random.normal(k1, (B2, S2, H2), dtype=jnp.float32)
    Y2 = jax.random.normal(k2, (B2, S2, H2), dtype=jnp.float32)
    g2 = jnp.ones((H2,), dtype=jnp.float32)
    b2 = jnp.zeros((H2,), dtype=jnp.float32)
    out2 = jax.block_until_ready(add_norm(X2, Y2, g2, b2))
    ref2 = add_norm_ref(X2, Y2, g2, b2)
    assert out2.shape == (B2, S2, H2)
    assert jnp.max(jnp.abs(out2 - ref2)) < 1e-4

    # 3) Multi-step grid with a partial (masked) last block, ragged R, f32.
    B3, S3, H3 = 4, 37, 256
    k3, k4 = jax.random.split(jax.random.PRNGKey(2))
    X3 = jax.random.normal(k3, (B3, S3, H3), dtype=jnp.float32)
    Y3 = jax.random.normal(k4, (B3, S3, H3), dtype=jnp.float32)
    g3 = jax.random.normal(jax.random.PRNGKey(3), (H3,), dtype=jnp.float32)
    b3 = jax.random.normal(jax.random.PRNGKey(4), (H3,), dtype=jnp.float32)
    out3 = jax.block_until_ready(add_norm(X3, Y3, g3, b3))
    ref3 = add_norm_ref(X3, Y3, g3, b3)
    assert out3.shape == (B3, S3, H3)
    assert jnp.max(jnp.abs(out3 - ref3)) < 1e-4

    print("KERNEL_OK")
</pallas_src>

<mosaic_0001>
module attributes {stable_mosaic.version = 11 : i64} {
  func.func @addnorm_kernel(%arg0: i32, %arg1: memref<16x32xf32, #tpu.memory_space<vmem>>, %arg2: memref<16x32xf32, #tpu.memory_space<vmem>>, %arg3: memref<1x32xf32, #tpu.memory_space<vmem>>, %arg4: memref<1x32xf32, #tpu.memory_space<vmem>>, %arg5: memref<16x32xf32, #tpu.memory_space<vmem>>) attributes {dimension_semantics = [#tpu.dimension_semantics<parallel>], iteration_bounds = array<i64: 1>, scalar_prefetch = 0 : i64, scratch_operands = 0 : i64, tpu.core_type = #tpu.core_type<tc>, window_params = [{transform_indices = @transform_0, window_bounds = array<i64: 16, 32>}, {transform_indices = @transform_1, window_bounds = array<i64: 16, 32>}, {pipeline_mode = #tpu.pipeline_mode<synchronous>, transform_indices = @transform_2, window_bounds = array<i64: 1, 32>}, {pipeline_mode = #tpu.pipeline_mode<synchronous>, transform_indices = @transform_3, window_bounds = array<i64: 1, 32>}, {transform_indices = @transform_4, window_bounds = array<i64: 16, 32>}]} {
    %c0 = arith.constant 0 : index
    %c0_0 = arith.constant 0 : index
    %0 = vector.load %arg1[%c0, %c0_0] : memref<16x32xf32, #tpu.memory_space<vmem>>, vector<16x32xf32>
    %c0_1 = arith.constant 0 : index
    %c0_2 = arith.constant 0 : index
    %1 = vector.load %arg2[%c0_1, %c0_2] : memref<16x32xf32, #tpu.memory_space<vmem>>, vector<16x32xf32>
    %2 = arith.addf %0, %1 : vector<16x32xf32>
    %cst = arith.constant dense<0.000000e+00> : vector<16xf32>
    %3 = vector.multi_reduction <add>, %2, %cst [1] : vector<16x32xf32> to vector<16xf32>
    %4 = vector.shape_cast %3 : vector<16xf32> to vector<16x1xf32>
    %cst_3 = arith.constant 3.200000e+01 : f32
    %5 = vector.broadcast %cst_3 : f32 to vector<16x1xf32>
    %6 = arith.divf %4, %5 : vector<16x1xf32>
    %7 = vector.broadcast %6 : vector<16x1xf32> to vector<16x32xf32>
    %8 = arith.subf %2, %7 : vector<16x32xf32>
    %9 = arith.mulf %8, %8 : vector<16x32xf32>
    %cst_4 = arith.constant dense<0.000000e+00> : vector<16xf32>
    %10 = vector.multi_reduction <add>, %9, %cst_4 [1] : vector<16x32xf32> to vector<16xf32>
    %11 = vector.shape_cast %10 : vector<16xf32> to vector<16x1xf32>
    %cst_5 = arith.constant 3.200000e+01 : f32
    %12 = vector.broadcast %cst_5 : f32 to vector<16x1xf32>
    %13 = arith.divf %11, %12 : vector<16x1xf32>
    %cst_6 = arith.constant 9.99999974E-6 : f32
    %14 = vector.broadcast %cst_6 : f32 to vector<16x1xf32>
    %15 = arith.addf %13, %14 : vector<16x1xf32>
    %16 = math.rsqrt %15 : vector<16x1xf32>
    %c0_7 = arith.constant 0 : index
    %c0_8 = arith.constant 0 : index
    %17 = vector.load %arg3[%c0_7, %c0_8] : memref<1x32xf32, #tpu.memory_space<vmem>>, vector<1x32xf32>
    %c0_9 = arith.constant 0 : index
    %c0_10 = arith.constant 0 : index
    %18 = vector.load %arg4[%c0_9, %c0_10] : memref<1x32xf32, #tpu.memory_space<vmem>>, vector<1x32xf32>
    %19 = vector.broadcast %16 : vector<16x1xf32> to vector<16x32xf32>
    %20 = arith.mulf %8, %19 : vector<16x32xf32>
    %21 = vector.broadcast %17 : vector<1x32xf32> to vector<16x32xf32>
    %22 = arith.mulf %20, %21 : vector<16x32xf32>
    %23 = vector.broadcast %18 : vector<1x32xf32> to vector<16x32xf32>
    %24 = arith.addf %22, %23 : vector<16x32xf32>
    %c0_11 = arith.constant 0 : index
    %c0_12 = arith.constant 0 : index
    %25 = vector.load %arg5[%c0_11, %c0_12] : memref<16x32xf32, #tpu.memory_space<vmem>>, vector<16x32xf32>
    tpu.vector_store %arg5[%c0_11, %c0_12], %24 {strides = array<i32>} : memref<16x32xf32, #tpu.memory_space<vmem>>, vector<16x32xf32>,
    return
  }
  func.func @transform_0(%arg0: i32) -> (i32, i32) {
    %c0_i32 = arith.constant 0 : i32
    %c0_i32_0 = arith.constant 0 : i32
    return %arg0, %c0_i32 : i32, i32
  }
  func.func @transform_1(%arg0: i32) -> (i32, i32) {
    %c0_i32 = arith.constant 0 : i32
    %c0_i32_0 = arith.constant 0 : i32
    return %arg0, %c0_i32 : i32, i32
  }
  func.func @transform_2(%arg0: i32) -> (i32, i32) {
    %c0_i32 = arith.constant 0 : i32
    %c0_i32_0 = arith.constant 0 : i32
    %c0_i32_1 = arith.constant 0 : i32
    return %c0_i32, %c0_i32_0 : i32, i32
  }
  func.func @transform_3(%arg0: i32) -> (i32, i32) {
    %c0_i32 = arith.constant 0 : i32
    %c0_i32_0 = arith.constant 0 : i32
    %c0_i32_1 = arith.constant 0 : i32
    return %c0_i32, %c0_i32_0 : i32, i32
  }
  func.func @transform_4(%arg0: i32) -> (i32, i32) {
    %c0_i32 = arith.constant 0 : i32
    %c0_i32_0 = arith.constant 0 : i32
    return %arg0, %c0_i32 : i32, i32
  }
}

</mosaic_0001>

<llo_original>
// kernel: tpu_custom_call.1
$region0: #{tpu_custom_call.1}
  #allocation0 [shape = 'u32[]', space=smem, size = 0x4, offset = 0x4, fixed_abs, tag = 'smem constant byte address 0x4 - core index']
  #allocation1 [shape = 'u32[144,128]{1,0:T(1,128)}', space=vmem, size = 0x12000, scoped, tag = 'internal scratch']
  %s0 = inlined_call_operand.hbm [shape: f32[16,32], index: 0, kind: input, shape index: {}]
  %s1 = inlined_call_operand.hbm [shape: f32[16,32], index: 1, kind: input, shape index: {}]
  %s2 = inlined_call_operand.vmem [shape: f32[1,32], index: 2, kind: input, shape index: {}]
  %s3 = inlined_call_operand.vmem [shape: f32[1,32], index: 3, kind: input, shape index: {}]
  %s4 = inlined_call_operand.hbm [shape: f32[16,32], index: 4, kind: output, shape index: {}]
  %s5 = sld [smem:[#allocation0]]
  $region34: #{tpu_custom_call.1} parent=0
    _
  %s7 = ssub.s32 1, %s5
  %s8 = scalar_select 0, %s7, %s5
  $region1: #{tpu_custom_call.1} parent=0
    #allocation2 [shape = 'u8[8192]{0}', space=vmem, size = 0x2000, scoped, tag = 'input window, operand 0, single buffered']
    #allocation3 [shape = 's32[1]{0}', space=sflag, size = 0x4, scoped, tag = 'scoped memory for tpu_custom_call.1']
    #allocation4 [shape = 's32[1]{0}', space=sflag, size = 0x4, scoped, tag = 'scoped memory for tpu_custom_call.1']
    #allocation5 [shape = 'u8[8192]{0}', space=vmem, size = 0x2000, scoped, tag = 'input window, operand 1, single buffered']
    #allocation6 [shape = 's32[1]{0}', space=sflag, size = 0x4, scoped, tag = 'scoped memory for tpu_custom_call.1']
    #allocation7 [shape = 'u8[8192]{0}', space=vmem, size = 0x2000, scoped, tag = 'output window, operand 0, single buffered']
    %9 = vsyncpa [#allocation3], 0
    %10 = vsyncpa [#allocation6], 0
    %11 = vsyncpa [#allocation4], 0
    // Predicated region
    $region2: #{tpu_custom_call.1} parent=1 // pred_check
      _
    $region3: #{tpu_custom_call.1} parent=1 // pred_check_branch
      %13 = sbr.rel (0) target = $region5
    $region4: #{tpu_custom_call.1} parent=1 // pred_region
      %s15 = ssub.s32 256, 256
      %16 = vsyncadd [#allocation3], %s15
      %s17 = sshll.u32 [#allocation2], 4
      %s18 = int_to_ptr.vmem [resolvable:$true] %s17
      %23 = dma.hbm_to_vmem [thread:$0]  %s0, 256, %s18, [#allocation3], 128, 128, 8
    $region5: #{tpu_custom_call.1} parent=1 // pred_fallthru
      _
    // Predicated region
    $region6: #{tpu_custom_call.1} parent=1 // pred_check
      _
    $region7: #{tpu_custom_call.1} parent=1 // pred_check_branch
      %25 = sbr.rel (0) target = $region9
    $region8: #{tpu_custom_call.1} parent=1 // pred_region
      %s27 = ssub.s32 256, 256
      %28 = vsyncadd [#allocation6], %s27
      %s29 = sshll.u32 [#allocation5], 4
      %s30 = int_to_ptr.vmem [resolvable:$true] %s29
      %35 = dma.hbm_to_vmem [thread:$0]  %s1, 256, %s30, [#allocation6], 128, 128, 8
    $region9: #{tpu_custom_call.1} parent=1 // pred_fallthru
      _
    // Predicated region
    $region10: #{tpu_custom_call.1} parent=1 // pred_check
      _
    $region11: #{tpu_custom_call.1} parent=1 // pred_check_branch
      %37 = sbr.rel (0) target = $region13
    $region12: #{tpu_custom_call.1} parent=1 // pred_region
      _
    $region13: #{tpu_custom_call.1} parent=1 // pred_fallthru
      _
    // Predicated region
    $region14: #{tpu_custom_call.1} parent=1 // pred_check
      _
    $region15: #{tpu_custom_call.1} parent=1 // pred_check_branch
      %39 = sbr.rel (0) target = $region17
    $region16: #{tpu_custom_call.1} parent=1 // pred_region
      _
    $region17: #{tpu_custom_call.1} parent=1 // pred_fallthru
      _
    // Predicated region
    $region18: #{tpu_custom_call.1} parent=1 // pred_check
      _
    $region19: #{tpu_custom_call.1} parent=1 // pred_check_branch
      %41 = sbr.rel (0) target = $region21
    $region20: #{tpu_custom_call.1} parent=1 // pred_region
      %42 = dma.done [#allocation3], 256
    $region21: #{tpu_custom_call.1} parent=1 // pred_fallthru
      _
    // Predicated region
    $region22: #{tpu_custom_call.1} parent=1 // pred_check
      _
    $region23: #{tpu_custom_call.1} parent=1 // pred_check_branch
      %44 = sbr.rel (0) target = $region25
    $region24: #{tpu_custom_call.1} parent=1 // pred_region
      %45 = dma.done [#allocation6], 256
    $region25: #{tpu_custom_call.1} parent=1 // pred_fallthru
      _
    %v46 = vld [vmem:[#allocation2] sm:$0xff]
    %v47 = vld [vmem:[#allocation2 + $0x8] sm:$0xff]
    %v48 = vld [vmem:[#allocation5] sm:$0xff]
    %v49 = vld [vmem:[#allocation5 + $0x8] sm:$0xff]
    %v50 = vadd.f32 %v46, %v48
    %v51 = vadd.f32 %v47, %v49
    %vm52 = vcmask 261120
    %v53 = vsel %vm52, %v50, 0.0
    %54 = vadd.xlane.f32.xlu0 %v53
    %v55 = vpop.xlane.xlu0 %54
    %v56 = vsel %vm52, %v51, 0.0
    %57 = vadd.xlane.f32.xlu0 %v56
    %v58 = vpop.xlane.xlu0 %57
    %v59 = vrcp.pop 32.0
    %v60 = vmul.f32 %v55, %v59
    %v61 = vmul.f32 %v58, %v59
    %v62 = vsub.f32 %v50, %v60
    %v63 = vsub.f32 %v51, %v61
    %v64 = vmul.f32 %v62, %v62
    %v65 = vmul.f32 %v63, %v63
    %v66 = vsel %vm52, %v64, 0.0
    %67 = vadd.xlane.f32.xlu0 %v66
    %v68 = vpop.xlane.xlu0 %67
    %v69 = vsel %vm52, %v65, 0.0
    %70 = vadd.xlane.f32.xlu0 %v69
    %v71 = vpop.xlane.xlu0 %70
    %v72 = vmul.f32 %v68, %v59
    %v73 = vmul.f32 %v71, %v59
    %v74 = vadd.f32 %v72, 1e-05
    %v75 = vadd.f32 %v73, 1e-05
    %v76 = vrsqrt.pop %v74
    %v77 = vrsqrt.pop %v75
    %v78 = vld [vmem:[%s2] sm:$0x1]
    %v79 = vld [vmem:[%s3] sm:$0x1]
    %v80 = vmul.f32 %v62, %v76
    %v81 = vmul.f32 %v63, %v77
    %v83 = vlaneseq
    %v84 = vshrl.u32 %v83, 7
    %v85 = vsub.s32 0, %v84
    %v86 = vrot.slane %v78, %v85
    %v88 = vmul.f32 %v80, %v86
    %v89 = vmul.f32 %v81, %v86
    %v91 = vlaneseq
    %v92 = vshrl.u32 %v91, 7
    %v93 = vsub.s32 0, %v92
    %v94 = vrot.slane %v79, %v93
    %v96 = vadd.f32 %v88, %v94
    %v97 = vadd.f32 %v89, %v94
    %98 = vst.msk [vmem:[#allocation7] sm:$0xff] %vm52, %v96
    %99 = vst.msk [vmem:[#allocation7 + $0x8] sm:$0xff] %vm52, %v97
    // Predicated region
    $region26: #{tpu_custom_call.1} parent=1 // pred_check
      _
    $region27: #{tpu_custom_call.1} parent=1 // pred_check_branch
      %101 = sbr.rel (0) target = $region29
    $region28: #{tpu_custom_call.1} parent=1 // pred_region
      %s103 = ssub.s32 256, 256
      %104 = vsyncadd [#allocation4], %s103
      %s105 = sshll.u32 [#allocation7], 4
      %s106 = int_to_ptr.vmem [resolvable:$true] %s105
      %111 = dma.vmem_to_hbm [thread:$0]  %s106, 256, %s4, [#allocation4], 128, 128, 8
    $region29: #{tpu_custom_call.1} parent=1 // pred_fallthru
      _
    // Predicated region
    $region30: #{tpu_custom_call.1} parent=1 // pred_check
      _
    $region31: #{tpu_custom_call.1} parent=1 // pred_check_branch
      %113 = sbr.rel (0) target = $region33
    $region32: #{tpu_custom_call.1} parent=1 // pred_region
      %114 = dma.done [#allocation4], 256
    $region33: #{tpu_custom_call.1} parent=1 // pred_fallthru
      _
    %115 = vsyncpa [#allocation3], 1
    %116 = vsyncpa [#allocation6], 1
    %117 = vsyncpa [#allocation4], 1

</llo_original>
